<compile_context>
chip_gen: v7x
topology: tpu7x:2x2x1
jax: 0.10.0
libtpu: 0.0.40
codegen_flags: <defaults>
</compile_context>

<pallas_src>
import jax
import jax.numpy as jnp
from jax import lax
from jax.experimental import pallas as pl
from jax.experimental.pallas import tpu as pltpu

FILTER_SIZES = (1, 2, 3, 5)
NUM_FILTERS = 36
KMAX = max(FILTER_SIZES)


def cnn_text_kernel(emb_ref, w_ref, b_ref, vlen_ref, fcw_ref, fcb_ref, out_ref):
    Bt, Spad, E = emb_ref.shape          # emb is zero-padded by KMAX-1 rows in seq
    S = Spad - (KMAX - 1)
    C = w_ref.shape[1]                   # lane-dense padded feature dim (256)

    emb = emb_ref[...]                   # (Bt, S+KMAX-1, E) bf16

    # Single im2col build: row l holds [emb[l], emb[l+1], ..., emb[l+KMAX-1]].
    slab = jnp.concatenate([emb[:, k:k + S, :] for k in range(KMAX)], axis=-1)
    slab = slab.reshape(Bt * S, KMAX * E)                       # (Bt*S, 160) bf16

    # One fused MXU matmul for all four conv branches, f32 accumulation.
    conv = jnp.dot(slab, w_ref[...], preferred_element_type=jnp.float32)  # (Bt*S, C)
    conv = jnp.maximum(conv + b_ref[...], 0.0)                  # bias + ReLU
    conv = conv.reshape(Bt, S, C)

    # Mask positions that fall outside each branch's valid conv length
    # (they touched the zero-padded embedding rows) before max-over-time.
    pos = lax.broadcasted_iota(jnp.int32, (Bt, S, C), 1)
    masked = jnp.where(pos < vlen_ref[...].reshape(1, 1, C), conv, -jnp.inf)
    feat = jnp.max(masked, axis=1)                              # (Bt, C)

    # Dropout(0.1): identity in eval mode.
    # FC as VPU multiply + lane reduce (fc weight zero on padded columns).
    logit = jnp.sum(feat * fcw_ref[...], axis=-1, keepdims=True) + fcb_ref[...]
    out_ref[...] = logit                                        # (Bt, 1)


def _pick_batch_tile(B):
    if B <= 8:
        return B
    for t in (128, 64, 32, 16, 8):
        if B % t == 0:
            return t
    return B


def build_fused_params(params, S, E):
    """Pack the four conv banks + biases + FC into lane-dense fused tensors."""
    C = len(FILTER_SIZES) * NUM_FILTERS                 # 144
    C_pad = ((C + 127) // 128) * 128                    # 256 (multiple of 128)
    w_big = jnp.zeros((KMAX * E, C_pad), jnp.float32)
    b_big = jnp.zeros((1, C_pad), jnp.float32)
    vlen = jnp.full((1, C_pad), S, jnp.int32)
    fcw = jnp.zeros((1, C_pad), jnp.float32)
    for idx, K in enumerate(FILTER_SIZES):
        col = idx * NUM_FILTERS
        wk = params[f"w{K}"]                            # (K, E, F)
        w_big = w_big.at[: K * E, col:col + NUM_FILTERS].set(
            wk.reshape(K * E, NUM_FILTERS))
        b_big = b_big.at[:, col:col + NUM_FILTERS].set(params[f"b{K}"])
        vlen = vlen.at[:, col:col + NUM_FILTERS].set(S - K + 1)
    fcw = fcw.at[:, :C].set(params["fcw"][:, 0][None, :])
    return w_big.astype(jnp.bfloat16), b_big, vlen, fcw, params["fcb"]


def cnn_text_forward(emb, params):
    B, S, E = emb.shape
    w_big, b_big, vlen, fcw, fcb = build_fused_params(params, S, E)
    C_pad = w_big.shape[1]
    Spad = S + KMAX - 1

    # Zero-pad the sequence so the im2col slab is rectangular; bf16 MXU inputs.
    emb_pad = jnp.pad(emb, ((0, 0), (0, KMAX - 1), (0, 0))).astype(jnp.bfloat16)

    B_tile = _pick_batch_tile(B)
    grid = (B // B_tile,)

    def const_spec(shape):
        return pl.BlockSpec(shape, lambda i, _n=len(shape): (0,) * _n)

    return pl.pallas_call(
        cnn_text_kernel,
        out_shape=jax.ShapeDtypeStruct((B, 1), jnp.float32),
        grid=grid,
        in_specs=[
            pl.BlockSpec((B_tile, Spad, E), lambda i: (i, 0, 0)),  # emb tiles
            const_spec((KMAX * E, C_pad)),                         # fused conv W
            const_spec((1, C_pad)),                                # fused bias
            const_spec((1, C_pad)),                                # valid lengths
            const_spec((1, C_pad)),                                # FC weight row
            const_spec((1, 1)),                                    # FC bias
        ],
        out_specs=pl.BlockSpec((B_tile, 1), lambda i: (i, 0)),
        compiler_params=pltpu.CompilerParams(
            dimension_semantics=("parallel",)),
    )(emb_pad, w_big, b_big, vlen, fcw, fcb)


def init_params(key, embed_size):
    F = NUM_FILTERS
    keys = jax.random.split(key, 2 * len(FILTER_SIZES) + 2)
    params = {}
    for i, K in enumerate(FILTER_SIZES):
        # PyTorch conv weight is (F, 1, K, E); we store it as (K, E, F).
        params[f"w{K}"] = 0.05 * jax.random.normal(
            keys[2 * i], (K, embed_size, F), jnp.float32)
        params[f"b{K}"] = 0.05 * jax.random.normal(
            keys[2 * i + 1], (1, F), jnp.float32)
    # nn.Linear(4*F, 1): stored as (4*F, 1) weight + (1, 1) bias.
    params["fcw"] = 0.05 * jax.random.normal(
        keys[-2], (len(FILTER_SIZES) * F, 1), jnp.float32)
    params["fcb"] = 0.05 * jax.random.normal(keys[-1], (1, 1), jnp.float32)
    return params


def reference_forward(emb, params):
    # Pure-JAX f32 reference mirroring the PyTorch forward (eval mode).
    feats = []
    B, S, E = emb.shape
    for K in FILTER_SIZES:
        L = S - K + 1
        acc = jnp.zeros((B, L, NUM_FILTERS), jnp.float32)
        for k in range(K):
            acc = acc + jnp.einsum("ble,ef->blf", emb[:, k:k + L, :],
                                   params[f"w{K}"][k])
        acc = jnp.maximum(acc + params[f"b{K}"][None, :, :], 0.0)
        feats.append(jnp.max(acc, axis=1))
    cat = jnp.concatenate(feats, axis=1)
    return cat @ params["fcw"] + params["fcb"]


if __name__ == "__main__":
    key = jax.random.PRNGKey(0)
    k_tok, k_emb, k_par = jax.random.split(key, 3)

    batch, seq_len, embed_size, max_features = 2, 16, 32, 100

    # Token ids (the module's input x) and embedding table (nn.Embedding).
    x = jax.random.randint(k_tok, (batch, seq_len), 0, max_features, dtype=jnp.int32)
    embedding_table = 0.1 * jax.random.normal(
        k_emb, (max_features, embed_size), jnp.float32)
    params = init_params(k_par, embed_size)

    # Embedding lookup (gather) stays in plain JAX glue at these shapes.
    emb = jnp.take(embedding_table, x, axis=0)  # (B, S, E)

    logits = cnn_text_forward(emb, params)
    jax.block_until_ready(logits)

    ref = reference_forward(emb, params)
    assert logits.shape == (batch, 1)
    # bf16 MXU inputs vs. f32 reference -> modest tolerance.
    assert jnp.allclose(logits, ref, atol=1e-2, rtol=1e-2)
    print("KERNEL_OK")
</pallas_src>

<mosaic_0001>
module attributes {stable_mosaic.version = 11 : i64} {
  func.func @cnn_text_kernel(%arg0: i32, %arg1: memref<2x20x32xbf16, #tpu.memory_space<vmem>>, %arg2: memref<160x256xbf16, #tpu.memory_space<vmem>>, %arg3: memref<1x256xf32, #tpu.memory_space<vmem>>, %arg4: memref<1x256xi32, #tpu.memory_space<vmem>>, %arg5: memref<1x256xf32, #tpu.memory_space<vmem>>, %arg6: memref<1x1xf32, #tpu.memory_space<vmem>>, %arg7: memref<2x1xf32, #tpu.memory_space<vmem>>) attributes {dimension_semantics = [#tpu.dimension_semantics<parallel>], iteration_bounds = array<i64: 1>, scalar_prefetch = 0 : i64, scratch_operands = 0 : i64, tpu.core_type = #tpu.core_type<tc>, window_params = [{transform_indices = @transform_0, window_bounds = array<i64: 2, 20, 32>}, {pipeline_mode = #tpu.pipeline_mode<synchronous>, transform_indices = @transform_1, window_bounds = array<i64: 160, 256>}, {pipeline_mode = #tpu.pipeline_mode<synchronous>, transform_indices = @transform_2, window_bounds = array<i64: 1, 256>}, {pipeline_mode = #tpu.pipeline_mode<synchronous>, transform_indices = @transform_3, window_bounds = array<i64: 1, 256>}, {pipeline_mode = #tpu.pipeline_mode<synchronous>, transform_indices = @transform_4, window_bounds = array<i64: 1, 256>}, {pipeline_mode = #tpu.pipeline_mode<synchronous>, transform_indices = @transform_5, window_bounds = array<i64: 1, 1>}, {transform_indices = @transform_6, window_bounds = array<i64: 2, 1>}]} {
    %c0 = arith.constant 0 : index
    %c0_0 = arith.constant 0 : index
    %c0_1 = arith.constant 0 : index
    %0 = vector.load %arg1[%c0, %c0_0, %c0_1] : memref<2x20x32xbf16, #tpu.memory_space<vmem>>, vector<2x20x32xbf16>
    %1 = vector.extract_strided_slice %0 {offsets = [0, 0, 0], sizes = [2, 16, 32], strides = [1, 1, 1]} : vector<2x20x32xbf16> to vector<2x16x32xbf16>
    %2 = vector.extract_strided_slice %0 {offsets = [0, 1, 0], sizes = [2, 16, 32], strides = [1, 1, 1]} : vector<2x20x32xbf16> to vector<2x16x32xbf16>
    %3 = vector.extract_strided_slice %0 {offsets = [0, 2, 0], sizes = [2, 16, 32], strides = [1, 1, 1]} : vector<2x20x32xbf16> to vector<2x16x32xbf16>
    %4 = vector.extract_strided_slice %0 {offsets = [0, 3, 0], sizes = [2, 16, 32], strides = [1, 1, 1]} : vector<2x20x32xbf16> to vector<2x16x32xbf16>
    %5 = vector.extract_strided_slice %0 {offsets = [0, 4, 0], sizes = [2, 16, 32], strides = [1, 1, 1]} : vector<2x20x32xbf16> to vector<2x16x32xbf16>
    %6 = tpu.concatenate %1, %2, %3, %4, %5 in 2 : vector<2x16x32xbf16>, vector<2x16x32xbf16>, vector<2x16x32xbf16>, vector<2x16x32xbf16>, vector<2x16x32xbf16> -> vector<2x16x160xbf16>
    %7 = vector.shape_cast %6 : vector<2x16x160xbf16> to vector<32x160xbf16>
    %c0_2 = arith.constant 0 : index
    %c0_3 = arith.constant 0 : index
    %8 = vector.load %arg2[%c0_2, %c0_3] : memref<160x256xbf16, #tpu.memory_space<vmem>>, vector<160x256xbf16>
    %cst = arith.constant dense<0.000000e+00> : vector<32x256xf32>
    %9 = tpu.matmul %7, %8, %cst {dimension_numbers = #tpu.dot_dimension_numbers<[1], [0], [0], [1], [0, 0, 1, 1], [], []>} : vector<32x160xbf16>, vector<160x256xbf16>, vector<32x256xf32> -> vector<32x256xf32>
    %c0_4 = arith.constant 0 : index
    %c0_5 = arith.constant 0 : index
    %10 = vector.load %arg3[%c0_4, %c0_5] : memref<1x256xf32, #tpu.memory_space<vmem>>, vector<1x256xf32>
    %11 = vector.broadcast %10 : vector<1x256xf32> to vector<32x256xf32>
    %12 = arith.addf %9, %11 : vector<32x256xf32>
    %cst_6 = arith.constant 0.000000e+00 : f32
    %13 = vector.broadcast %cst_6 : f32 to vector<32x256xf32>
    %14 = arith.maximumf %12, %13 : vector<32x256xf32>
    %15 = vector.shape_cast %14 : vector<32x256xf32> to vector<2x16x256xf32>
    %16 = tpu.iota {dimensions = array<i32: 1>} : vector<2x16x256xi32>
    %c0_7 = arith.constant 0 : index
    %c0_8 = arith.constant 0 : index
    %17 = vector.load %arg4[%c0_7, %c0_8] : memref<1x256xi32, #tpu.memory_space<vmem>>, vector<1x256xi32>
    %18 = vector.shape_cast %17 : vector<1x256xi32> to vector<1x1x256xi32>
    %19 = vector.broadcast %18 : vector<1x1x256xi32> to vector<2x16x256xi32>
    %20 = arith.cmpi slt, %16, %19 : vector<2x16x256xi32>
    %cst_9 = arith.constant 0xFF800000 : f32
    %21 = vector.broadcast %cst_9 : f32 to vector<2x16x256xf32>
    %22 = arith.select %20, %15, %21 : vector<2x16x256xi1>, vector<2x16x256xf32>
    %cst_10 = arith.constant dense<0xFF800000> : vector<2x256xf32>
    %23 = vector.multi_reduction <maximumf>, %22, %cst_10 [1] : vector<2x16x256xf32> to vector<2x256xf32>
    %c0_11 = arith.constant 0 : index
    %c0_12 = arith.constant 0 : index
    %24 = vector.load %arg5[%c0_11, %c0_12] : memref<1x256xf32, #tpu.memory_space<vmem>>, vector<1x256xf32>
    %25 = vector.broadcast %24 : vector<1x256xf32> to vector<2x256xf32>
    %26 = arith.mulf %23, %25 : vector<2x256xf32>
    %cst_13 = arith.constant dense<0.000000e+00> : vector<2xf32>
    %27 = vector.multi_reduction <add>, %26, %cst_13 [1] : vector<2x256xf32> to vector<2xf32>
    %28 = vector.shape_cast %27 : vector<2xf32> to vector<2x1xf32>
    %c0_14 = arith.constant 0 : index
    %c0_15 = arith.constant 0 : index
    %29 = vector.load %arg6[%c0_14, %c0_15] : memref<1x1xf32, #tpu.memory_space<vmem>>, vector<1x1xf32>
    %30 = vector.broadcast %29 : vector<1x1xf32> to vector<2x1xf32>
    %31 = arith.addf %28, %30 : vector<2x1xf32>
    %c0_16 = arith.constant 0 : index
    %c0_17 = arith.constant 0 : index
    %32 = vector.load %arg7[%c0_16, %c0_17] : memref<2x1xf32, #tpu.memory_space<vmem>>, vector<2x1xf32>
    tpu.vector_store %arg7[%c0_16, %c0_17], %31 {strides = array<i32>} : memref<2x1xf32, #tpu.memory_space<vmem>>, vector<2x1xf32>,
    return
  }
  func.func @transform_0(%arg0: i32) -> (i32, i32, i32) {
    %c0_i32 = arith.constant 0 : i32
    %c0_i32_0 = arith.constant 0 : i32
    %c0_i32_1 = arith.constant 0 : i32
    return %arg0, %c0_i32, %c0_i32_0 : i32, i32, i32
  }
  func.func @transform_1(%arg0: i32) -> (i32, i32) {
    %c0_i32 = arith.constant 0 : i32
    %c0_i32_0 = arith.constant 0 : i32
    %c0_i32_1 = arith.constant 0 : i32
    return %c0_i32, %c0_i32_0 : i32, i32
  }
  func.func @transform_2(%arg0: i32) -> (i32, i32) {
    %c0_i32 = arith.constant 0 : i32
    %c0_i32_0 = arith.constant 0 : i32
    %c0_i32_1 = arith.constant 0 : i32
    return %c0_i32, %c0_i32_0 : i32, i32
  }
  func.func @transform_3(%arg0: i32) -> (i32, i32) {
    %c0_i32 = arith.constant 0 : i32
    %c0_i32_0 = arith.constant 0 : i32
    %c0_i32_1 = arith.constant 0 : i32
    return %c0_i32, %c0_i32_0 : i32, i32
  }
  func.func @transform_4(%arg0: i32) -> (i32, i32) {
    %c0_i32 = arith.constant 0 : i32
    %c0_i32_0 = arith.constant 0 : i32
    %c0_i32_1 = arith.constant 0 : i32
    return %c0_i32, %c0_i32_0 : i32, i32
  }
  func.func @transform_5(%arg0: i32) -> (i32, i32) {
    %c0_i32 = arith.constant 0 : i32
    %c0_i32_0 = arith.constant 0 : i32
    %c0_i32_1 = arith.constant 0 : i32
    return %c0_i32, %c0_i32_0 : i32, i32
  }
  func.func @transform_6(%arg0: i32) -> (i32, i32) {
    %c0_i32 = arith.constant 0 : i32
    %c0_i32_0 = arith.constant 0 : i32
    return %arg0, %c0_i32 : i32, i32
  }
}

</mosaic_0001>

<llo_original>
// kernel: tpu_custom_call.1
$region0: #{tpu_custom_call.1}
  #allocation0 [shape = 'u32[]', space=smem, size = 0x4, offset = 0x4, fixed_abs, tag = 'smem constant byte address 0x4 - core index']
  #allocation1 [shape = 'u32[144,128]{1,0:T(1,128)}', space=vmem, size = 0x12000, scoped, tag = 'internal scratch']
  #allocation2 [shape = 'f32[1,1]{1,0:T(1,128)S(1)}', space=vmem, size = 0x200, scoped, tag = 'scoped memory for tpu_custom_call.1']
  %s0 = inlined_call_operand.vmem [shape: bf16[2,20,32], index: 0, kind: input, shape index: {}]
  %s1 = inlined_call_operand.hbm [shape: bf16[160,256], index: 1, kind: input, shape index: {}]
  %s2 = inlined_call_operand.vmem [shape: f32[1,256], index: 2, kind: input, shape index: {}]
  %s3 = inlined_call_operand.vmem [shape: s32[1,256], index: 3, kind: input, shape index: {}]
  %s4 = inlined_call_operand.vmem [shape: f32[1,256], index: 4, kind: input, shape index: {}]
  %s5 = inlined_call_operand.<no memory space> [shape: f32[1,1], index: 5, kind: input, shape index: {}]
  %s6 = inlined_call_operand.vmem [shape: f32[2,1], index: 6, kind: output, shape index: {}]
  %s7 = sld [smem:[#allocation0]]
  $region38: #{tpu_custom_call.1} parent=0
    _
  %s9 = ssub.s32 1, %s7
  %s10 = scalar_select 0, %s9, %s7
  %v11 = vstv %s5
  %12 = vst [vmem:[#allocation2] sm:$0x1] %v11
  $region1: #{tpu_custom_call.1} parent=0
    #allocation3 [shape = 'u8[81920]{0}', space=vmem, size = 0x14000, scoped, tag = 'input window, operand 1, single buffered']
    #allocation4 [shape = 's32[1]{0}', space=sflag, size = 0x4, scoped, tag = 'scoped memory for tpu_custom_call.1']
    %13 = vsyncpa [#allocation4], 0
    // Predicated region
    $region2: #{tpu_custom_call.1} parent=1 // pred_check
      _
    $region3: #{tpu_custom_call.1} parent=1 // pred_check_branch
      %15 = sbr.rel (0) target = $region5
    $region4: #{tpu_custom_call.1} parent=1 // pred_region
      _
    $region5: #{tpu_custom_call.1} parent=1 // pred_fallthru
      _
    // Predicated region
    $region6: #{tpu_custom_call.1} parent=1 // pred_check
      _
    $region7: #{tpu_custom_call.1} parent=1 // pred_check_branch
      %17 = sbr.rel (0) target = $region9
    $region8: #{tpu_custom_call.1} parent=1 // pred_region
      %s19 = ssub.s32 2560, 2560
      %20 = vsyncadd [#allocation4], %s19
      %s21 = sshll.u32 [#allocation3], 4
      %s22 = int_to_ptr.vmem [resolvable:$true] %s21
      %27 = dma.hbm_to_vmem [thread:$0]  %s1, 2560, %s22, [#allocation4], 128, 128, 8
    $region9: #{tpu_custom_call.1} parent=1 // pred_fallthru
      _
    // Predicated region
    $region10: #{tpu_custom_call.1} parent=1 // pred_check
      _
    $region11: #{tpu_custom_call.1} parent=1 // pred_check_branch
      %29 = sbr.rel (0) target = $region13
    $region12: #{tpu_custom_call.1} parent=1 // pred_region
      _
    $region13: #{tpu_custom_call.1} parent=1 // pred_fallthru
      _
    // Predicated region
    $region14: #{tpu_custom_call.1} parent=1 // pred_check
      _
    $region15: #{tpu_custom_call.1} parent=1 // pred_check_branch
      %31 = sbr.rel (0) target = $region17
    $region16: #{tpu_custom_call.1} parent=1 // pred_region
      _
    $region17: #{tpu_custom_call.1} parent=1 // pred_fallthru
      _
    // Predicated region
    $region18: #{tpu_custom_call.1} parent=1 // pred_check
      _
    $region19: #{tpu_custom_call.1} parent=1 // pred_check_branch
      %33 = sbr.rel (0) target = $region21
    $region20: #{tpu_custom_call.1} parent=1 // pred_region
      _
    $region21: #{tpu_custom_call.1} parent=1 // pred_fallthru
      _
    // Predicated region
    $region22: #{tpu_custom_call.1} parent=1 // pred_check
      _
    $region23: #{tpu_custom_call.1} parent=1 // pred_check_branch
      %35 = sbr.rel (0) target = $region25
    $region24: #{tpu_custom_call.1} parent=1 // pred_region
      _
    $region25: #{tpu_custom_call.1} parent=1 // pred_fallthru
      _
    // Predicated region
    $region26: #{tpu_custom_call.1} parent=1 // pred_check
      _
    $region27: #{tpu_custom_call.1} parent=1 // pred_check_branch
      %37 = sbr.rel (0) target = $region29
    $region28: #{tpu_custom_call.1} parent=1 // pred_region
      %38 = dma.done [#allocation4], 2560
    $region29: #{tpu_custom_call.1} parent=1 // pred_fallthru
      _
    %v40 = vld [vmem:[%s0] sm:$0xf]
    %v41 = vld [vmem:[%s0 + $0x4] sm:$0xf]
    %v42 = vld [vmem:[%s0 + $0x8] sm:$0x3]
    %v43 = vld [vmem:[%s0 + $0xc] sm:$0xf]
    %v44 = vld [vmem:[%s0 + $0x10] sm:$0xf]
    %v45 = vld [vmem:[%s0 + $0x14] sm:$0x3]
    %v50 = vunpack.c.l.b16 %v40
    %v51 = vunpack.c.l.b16 %v41
    %v52 = vunpack.c.l.b16 %v43
    %v53 = vunpack.c.l.b16 %v44
    %v54 = vpack.c.b16 %v51, %v50
    %v55 = vpack.c.b16 %v53, %v52
    %v58 = vunpack.c.l.b16 %v42
    %v59 = vunpack.c.l.b16 %v45
    %v60 = vpack.c.b16 %v58, %v58
    %v61 = vpack.c.b16 %v59, %v59
    %vm62 = vsmask.f32 7424
    %v64 = vshrl.u32 %v54, 16
    %v66 = vshll.u32 %v54, 16
    %v68 = vrot.slane %v66, 1
    %v69 = vor.u32 %v64, %v68
    %v71 = vshll.u32 %v60, 16
    %v73 = vrot.slane %v71, 1
    %v74 = vsel %vm62, %v69, %v73
    %v76 = vshrl.u32 %v55, 16
    %v78 = vshll.u32 %v55, 16
    %v80 = vrot.slane %v78, 1
    %v81 = vor.u32 %v76, %v80
    %v83 = vshll.u32 %v61, 16
    %v85 = vrot.slane %v83, 1
    %v86 = vsel %vm62, %v81, %v85
    %87 = vrot.lane.b32.xlu0 %v74, 32
    %v88 = vpop.permute.xlu0 %87
    %89 = vrot.lane.b32.xlu0 %v86, 32
    %v90 = vpop.permute.xlu0 %89
    %vm91 = vcmask 1046528
    %v92 = vrot.slane %v54, 1
    %v93 = vrot.slane %v60, 1
    %v94 = vsel %vm91, %v92, %v93
    %v95 = vrot.slane %v55, 1
    %v96 = vrot.slane %v61, 1
    %v97 = vsel %vm91, %v95, %v96
    %98 = vrot.lane.b32.xlu0 %v94, 64
    %v99 = vpop.permute.xlu0 %98
    %100 = vrot.lane.b32.xlu0 %v97, 64
    %v101 = vpop.permute.xlu0 %100
    %vm102 = vsmask.f32 6400
    %v103 = vrot.slane %v64, 1
    %v104 = vrot.slane %v66, 2
    %v105 = vor.u32 %v103, %v104
    %v106 = vshrl.u32 %v60, 16
    %v108 = vrot.slane %v106, 1
    %v109 = vrot.slane %v71, 2
    %v110 = vor.u32 %v108, %v109
    %v111 = vsel %vm102, %v105, %v110
    %v112 = vrot.slane %v76, 1
    %v113 = vrot.slane %v78, 2
    %v114 = vor.u32 %v112, %v113
    %v115 = vshrl.u32 %v61, 16
    %v117 = vrot.slane %v115, 1
    %v118 = vrot.slane %v83, 2
    %v119 = vor.u32 %v117, %v118
    %v120 = vsel %vm102, %v114, %v119
    %121 = vrot.lane.b32.xlu0 %v111, 96
    %v122 = vpop.permute.xlu0 %121
    %123 = vrot.lane.b32.xlu0 %v120, 96
    %v124 = vpop.permute.xlu0 %123
    %vm125 = vcmask 1045504
    %v126 = vrot.slane %v54, 2
    %v127 = vrot.slane %v60, 2
    %v128 = vsel %vm125, %v126, %v127
    %v129 = vrot.slane %v55, 2
    %v130 = vrot.slane %v61, 2
    %v131 = vsel %vm125, %v129, %v130
    %vm132 = vcmask 261120
    %v134 = vsel %vm132, %v54, %v88
    %v136 = vsel %vm132, %v55, %v90
    %vm137 = vcmask 523264
    %v139 = vsel %vm137, %v134, %v99
    %v141 = vsel %vm137, %v136, %v101
    %vm142 = vcmask 785408
    %v144 = vsel %vm142, %v139, %v122
    %v147 = vsel %vm142, %v141, %v124
    %v149 = vld [vmem:[#allocation3] sm:$0xff]
    %v150 = vld [vmem:[#allocation3 + $0x8] sm:$0xff]
    %v151 = vld [vmem:[#allocation3 + $0x10] sm:$0xff]
    %v152 = vld [vmem:[#allocation3 + $0x18] sm:$0xff]
    %v153 = vld [vmem:[#allocation3 + $0x20] sm:$0xff]
    %v154 = vld [vmem:[#allocation3 + $0x28] sm:$0xff]
    %v155 = vld [vmem:[#allocation3 + $0x30] sm:$0xff]
    %v156 = vld [vmem:[#allocation3 + $0x38] sm:$0xff]
    %v157 = vld [vmem:[#allocation3 + $0x40] sm:$0xff]
    %v158 = vld [vmem:[#allocation3 + $0x48] sm:$0xff]
    %v159 = vld [vmem:[#allocation3 + $0x50] sm:$0xff]
    %v160 = vld [vmem:[#allocation3 + $0x58] sm:$0xff]
    %v161 = vld [vmem:[#allocation3 + $0x60] sm:$0xff]
    %v162 = vld [vmem:[#allocation3 + $0x68] sm:$0xff]
    %v163 = vld [vmem:[#allocation3 + $0x70] sm:$0xff]
    %v164 = vld [vmem:[#allocation3 + $0x78] sm:$0xff]
    %v165 = vld [vmem:[#allocation3 + $0x80] sm:$0xff]
    %v166 = vld [vmem:[#allocation3 + $0x88] sm:$0xff]
    %v167 = vld [vmem:[#allocation3 + $0x90] sm:$0xff]
    %v168 = vld [vmem:[#allocation3 + $0x98] sm:$0xff]
    %v169 = vld [vmem:[%s2] sm:$0x3]
    %v171 = vlaneseq
    %v172 = vshrl.u32 %v171, 7
    %v173 = vsub.s32 0, %v172
    %v174 = vrot.slane %v169, %v173
    %v175 = vlaneseq
    %v176 = vshrl.u32 %v175, 7
    %v177 = vsub.s32 1, %v176
    %v178 = vrot.slane %v169, %v177
    %v201 = vunpack.c.l.b16 %v149
    %v202 = vunpack.c.h.b16 %v149
    %v203 = vunpack.c.l.b16 %v150
    %v204 = vunpack.c.h.b16 %v150
    %v205 = vunpack.c.l.b16 %v151
    %v206 = vunpack.c.h.b16 %v151
    %v207 = vunpack.c.l.b16 %v152
    %v208 = vunpack.c.h.b16 %v152
    %v209 = vunpack.c.l.b16 %v153
    %v210 = vunpack.c.h.b16 %v153
    %v211 = vunpack.c.l.b16 %v154
    %v212 = vunpack.c.h.b16 %v154
    %v213 = vunpack.c.l.b16 %v155
    %v214 = vunpack.c.h.b16 %v155
    %v215 = vunpack.c.l.b16 %v156
    %v216 = vunpack.c.h.b16 %v156
    %v217 = vunpack.c.l.b16 %v157
    %v218 = vunpack.c.h.b16 %v157
    %v219 = vunpack.c.l.b16 %v158
    %v220 = vunpack.c.h.b16 %v158
    %v221 = vunpack.c.l.b16 %v159
    %v222 = vunpack.c.h.b16 %v159
    %v223 = vunpack.c.l.b16 %v160
    %v224 = vunpack.c.h.b16 %v160
    %v225 = vunpack.c.l.b16 %v161
    %v226 = vunpack.c.h.b16 %v161
    %v227 = vunpack.c.l.b16 %v162
    %v228 = vunpack.c.h.b16 %v162
    %v229 = vunpack.c.l.b16 %v163
    %v230 = vunpack.c.h.b16 %v163
    %v231 = vunpack.c.l.b16 %v164
    %v232 = vunpack.c.h.b16 %v164
    %v233 = vunpack.c.l.b16 %v165
    %v234 = vunpack.c.h.b16 %v165
    %v235 = vunpack.c.l.b16 %v166
    %v236 = vunpack.c.h.b16 %v166
    %v237 = vunpack.c.l.b16 %v167
    %v238 = vunpack.c.h.b16 %v167
    %v239 = vunpack.c.l.b16 %v168
    %v240 = vunpack.c.h.b16 %v168
    %v241 = vpack.c.b16 %v203, %v201
    %v242 = vpack.c.b16 %v204, %v202
    %v243 = vpack.c.b16 %v207, %v205
    %v244 = vpack.c.b16 %v208, %v206
    %v245 = vpack.c.b16 %v211, %v209
    %v246 = vpack.c.b16 %v212, %v210
    %v247 = vpack.c.b16 %v215, %v213
    %v248 = vpack.c.b16 %v216, %v214
    %v249 = vpack.c.b16 %v219, %v217
    %v250 = vpack.c.b16 %v220, %v218
    %v251 = vpack.c.b16 %v223, %v221
    %v252 = vpack.c.b16 %v224, %v222
    %v253 = vpack.c.b16 %v227, %v225
    %v254 = vpack.c.b16 %v228, %v226
    %v255 = vpack.c.b16 %v231, %v229
    %v256 = vpack.c.b16 %v232, %v230
    %v257 = vpack.c.b16 %v235, %v233
    %v258 = vpack.c.b16 %v236, %v234
    %v259 = vpack.c.b16 %v239, %v237
    %v260 = vpack.c.b16 %v240, %v238
    %v282 = vsel %vm132, %v128, 0
    %v285 = vsel %vm132, %v131, 0
    %287 = vmatprep.subr.bf16.mxu0 %v242
    %288 = vmatpush1.bf16.msra.mxu0 %v241
    %289 = vmatprep.subr.bf16.mxu0 %v244
    %290 = vmatpush1.bf16.msra.mxu0 %v243
    %291 = vmatprep.subr.bf16.mxu0 %v246
    %292 = vmatpush1.bf16.msra.mxu0 %v245
    %293 = vmatprep.subr.bf16.mxu0 %v248
    %294 = vmatpush1.bf16.msra.mxu0 %v247
    %295 = vmatprep.subr.bf16.mxu0 %v250
    %296 = vmatpush1.bf16.msra.mxu0 %v249
    %297 = vmatprep.subr.bf16.mxu0 %v252
    %298 = vmatpush1.bf16.msra.mxu0 %v251
    %299 = vmatprep.subr.bf16.mxu0 %v254
    %300 = vmatpush1.bf16.msra.mxu0 %v253
    %301 = vmatprep.subr.bf16.mxu0 %v256
    %302 = vmatpush1.bf16.msra.mxu0 %v255
    %303 = vmatprep.subr.bf16.mxu0 %v258
    %304 = vmatpush1.bf16.msra.mxu0 %v257
    %305 = vmatprep.subr.bf16.mxu0 %v260
    %306 = vmatpush1.bf16.msra.mxu0 %v259
    %307 = vmatprep.subr.bf16.mxu0 0
    %308 = vmatpush1.bf16.msra.mxu0 0
    %309 = vmatprep.subr.bf16.mxu0 0
    %310 = vmatpush1.bf16.msra.mxu0 0
    %311 = vmatprep.subr.bf16.mxu0 0
    %312 = vmatpush1.bf16.msra.mxu0 0
    %313 = vmatprep.subr.bf16.mxu0 0
    %314 = vmatpush1.bf16.msra.mxu0 0
    %315 = vmatprep.subr.bf16.mxu0 0
    %316 = vmatpush1.bf16.msra.mxu0 0
    %317 = vmatprep.subr.bf16.mxu0 0
    %318 = vmatpush1.bf16.msra.mxu0 0
    %319 = vmatprep.mubr.bf16.mxu0 %v282
    %320 = vmatmul.mubr.bf16.gmra.mrb[0].mxu0 %v144
    %v321 = vpop.f32.mrb[0].mxu0
    %v322 = vadd.f32 %v174, %v321
    %v323 = vpop.f32.mrb[0].mxu0
    %v324 = vadd.f32 %v178, %v323
    %v325 = vpop.f32.mrb[0].mxu0
    %v326 = vadd.f32 %v174, %v325
    %v327 = vpop.f32.mrb[0].mxu0
    %v328 = vadd.f32 %v178, %v327
    %329 = vmatprep.mubr.bf16.mxu0 %v285
    %330 = vmatmul.mubr.bf16.gmra.mrb[0].mxu0 %v147
    %v331 = vpop.f32.mrb[0].mxu0
    %v332 = vadd.f32 %v174, %v331
    %v333 = vpop.f32.mrb[0].mxu0
    %v334 = vadd.f32 %v178, %v333
    %v335 = vpop.f32.mrb[0].mxu0
    %v336 = vadd.f32 %v174, %v335
    %v337 = vpop.f32.mrb[0].mxu0
    %v338 = vadd.f32 %v178, %v337
    %339 = vdwg.mxu0
    %v340 = vmax.f32 %v322, 0.0
    %v341 = vmax.f32 %v324, 0.0
    %v342 = vmax.f32 %v326, 0.0
    %v343 = vmax.f32 %v328, 0.0
    %v344 = vmax.f32 %v332, 0.0
    %v345 = vmax.f32 %v334, 0.0
    %v346 = vmax.f32 %v336, 0.0
    %v347 = vmax.f32 %v338, 0.0
    %v348 = vlaneseq
    %v349 = vshrl.u32 %v348, 7
    %v350 = vadd.s32 %v349, 8
    %v351 = vld [vmem:[%s3] sm:$0x3]
    %v352 = vlaneseq
    %v353 = vshrl.u32 %v352, 7
    %v354 = vsub.s32 0, %v353
    %v355 = vrot.slane %v351, %v354
    %v356 = vlaneseq
    %v357 = vshrl.u32 %v356, 7
    %v358 = vsub.s32 1, %v357
    %v359 = vrot.slane %v351, %v358
    %vm360 = vcmp.lt.s32.totalorder %v349, %v355
    %vm361 = vcmp.lt.s32.totalorder %v349, %v359
    %vm362 = vcmp.lt.s32.totalorder %v350, %v355
    %vm363 = vcmp.lt.s32.totalorder %v350, %v359
    %v364 = vsel %vm360, %v340, -inf
    %v365 = vsel %vm361, %v341, -inf
    %v366 = vsel %vm362, %v342, -inf
    %v367 = vsel %vm363, %v343, -inf
    %v368 = vsel %vm360, %v344, -inf
    %v369 = vsel %vm361, %v345, -inf
    %v370 = vsel %vm362, %v346, -inf
    %v371 = vsel %vm363, %v347, -inf
    %v372 = vmax.f32 %v364, %v366
    %v373 = vrot.slane %v372, 4
    %v374 = vmax.f32 %v372, %v373
    %v375 = vrot.slane %v374, 2
    %v376 = vmax.f32 %v374, %v375
    %v377 = vrot.slane %v376, 1
    %v378 = vmax.f32 %v376, %v377
    %v379 = vmax.f32 %v365, %v367
    %v380 = vrot.slane %v379, 4
    %v381 = vmax.f32 %v379, %v380
    %v382 = vrot.slane %v381, 2
    %v383 = vmax.f32 %v381, %v382
    %v384 = vrot.slane %v383, 1
    %v385 = vmax.f32 %v383, %v384
    %v386 = vmax.f32 %v368, %v370
    %v387 = vrot.slane %v386, 4
    %v388 = vmax.f32 %v386, %v387
    %v389 = vrot.slane %v388, 2
    %v390 = vmax.f32 %v388, %v389
    %v391 = vrot.slane %v390, 1
    %v392 = vmax.f32 %v390, %v391
    %v393 = vmax.f32 %v369, %v371
    %v394 = vrot.slane %v393, 4
    %v395 = vmax.f32 %v393, %v394
    %v396 = vrot.slane %v395, 2
    %v397 = vmax.f32 %v395, %v396
    %v398 = vrot.slane %v397, 1
    %v399 = vmax.f32 %v397, %v398
    %v400 = vld [vmem:[%s4] sm:$0x3]
    %v402 = vlaneseq
    %v403 = vshrl.u32 %v402, 7
    %v404 = vsub.s32 0, %v403
    %v405 = vrot.slane %v400, %v404
    %v406 = vlaneseq
    %v407 = vshrl.u32 %v406, 7
    %v408 = vsub.s32 1, %v407
    %v409 = vrot.slane %v400, %v408
    %v412 = vmul.f32 %v378, %v405
    %v413 = vmul.f32 %v385, %v409
    %v414 = vmul.f32 %v392, %v405
    %v415 = vmul.f32 %v399, %v409
    %v420 = vrot.slane %v414, 7
    %vm421 = vcmask 1041409
    %v422 = vsel %vm421, %v420, %v412
    %v423 = vrot.slane %v415, 7
    %v424 = vsel %vm421, %v423, %v413
    %vm427 = vcmask 1041408
    %v428 = vsel %vm427, %v422, 0.0
    %v429 = vsel %vm427, %v424, 0.0
    %v430 = vadd.f32 %v428, %v429
    %431 = vadd.xlane.f32.xlu0 %v430
    %v432 = vpop.xlane.xlu0 %431
    %v433 = vld [vmem:[#allocation2] sm:$0x1]
    %v435 = vlaneseq
    %v436 = vshrl.u32 %v435, 7
    %v437 = vsub.s32 0, %v436
    %v438 = vrot.slane %v433, %v437
    %v440 = vadd.f32 %v432, %v438
    %vm441 = vcmask 1024
    %442 = vst.msk [vmem:[%s6] sm:$0x3] %vm441, %v440
    // Predicated region
    $region30: #{tpu_custom_call.1} parent=1 // pred_check
      _
    $region31: #{tpu_custom_call.1} parent=1 // pred_check_branch
      %444 = sbr.rel (0) target = $region33
    $region32: #{tpu_custom_call.1} parent=1 // pred_region
      _
    $region33: #{tpu_custom_call.1} parent=1 // pred_fallthru
      _
    // Predicated region
    $region34: #{tpu_custom_call.1} parent=1 // pred_check
      _
    $region35: #{tpu_custom_call.1} parent=1 // pred_check_branch
      %446 = sbr.rel (0) target = $region37
    $region36: #{tpu_custom_call.1} parent=1 // pred_region
      _
    $region37: #{tpu_custom_call.1} parent=1 // pred_fallthru
      _
    %447 = vsyncpa [#allocation4], 1

</llo_original>
